<compile_context>
chip_gen: v5e
topology: v5e:2x2
jax: 0.10.0
libtpu: 0.0.40
codegen_flags: <defaults>
</compile_context>

<pallas_src>
import math

import jax
import jax.numpy as jnp
from jax.experimental import pallas as pl
from jax.experimental.pallas import tpu as pltpu


_INV_SQRT2 = 1.0 / math.sqrt(2.0)


def _gelu_exact(x):
    # PyTorch nn.GELU() default: 0.5 * x * (1 + erf(x / sqrt(2)))
    return 0.5 * x * (1.0 + jax.lax.erf(x * _INV_SQRT2))


def _round_up(n, m):
    return ((n + m - 1) // m) * m


# ----------------------------------------------------------------------------
# Kernel: one batch tile per grid step; folded/padded weights stay resident.
# ----------------------------------------------------------------------------
def reg_head_kernel(x_ref, w1_ref, b1_ref, w2_ref, b2_ref, o_ref):
    x = x_ref[...]
    if x.dtype != w1_ref.dtype:          # static trace-time branch
        x = x.astype(w1_ref.dtype)

    # Linear1 (BatchNorm already folded in): bf16 x bf16 -> f32 accumulation.
    h = jnp.dot(x, w1_ref[...], preferred_element_type=jnp.float32) + b1_ref[...]

    # Exact-erf GELU in f32 on the VPU (parity with torch.nn.GELU()).
    h = _gelu_exact(h)

    # Dropout(p=0.1) is identity at inference time.
    # TODO(synk): training-mode stochastic dropout (pltpu.prng_*) not implemented.

    # Linear2: lane-dense (padded-to-128) output block, f32 accumulation.
    o = jnp.dot(h.astype(w2_ref.dtype), w2_ref[...],
                preferred_element_type=jnp.float32) + b2_ref[...]
    o_ref[...] = o.astype(o_ref.dtype)


# ----------------------------------------------------------------------------
# One-time weight prep: fold eval-mode BN into Linear1, lane-pad, cast to bf16.
# ----------------------------------------------------------------------------
def prepare_reg_head_params(params, *, compute_dtype=jnp.bfloat16, eps=1e-6):
    """Returns (prepped_dict, num_classes). Call ONCE at model load."""
    w1 = params["w1"].astype(jnp.float32)            # (C, H)   = torch weight.T
    w2 = params["w2"].astype(jnp.float32)            # (H, Nc)  = torch weight.T
    b1 = params["b1"].astype(jnp.float32).reshape(-1)
    b2 = params["b2"].astype(jnp.float32).reshape(-1)
    C, H = w1.shape
    Nc = w2.shape[1]

    # BatchNorm2d (eval) over (B, C, 1, 1) is a per-channel affine; fold it
    # into Linear1:  (x*scale + shift) @ w1 + b1 == x @ (scale*w1) + (shift@w1 + b1)
    inv_std = jax.lax.rsqrt(params["running_var"].astype(jnp.float32) + eps)
    scale = params["gamma"].astype(jnp.float32) * inv_std
    shift = (params["beta"].astype(jnp.float32)
             - params["running_mean"].astype(jnp.float32) * scale)
    w1f = w1 * scale[:, None]
    b1f = b1 + shift @ w1

    # Lane-pad hidden and num_classes up to multiples of 128 so the
    # intermediate and the output blocks are full-vreg-width (unmasked stores,
    # full MXU columns). Zero padding is exact: GELU(0)=0 and zero w2 rows/cols
    # contribute nothing; padded output columns are sliced off in the wrapper.
    Hp = _round_up(H, 128)
    Np = _round_up(Nc, 128)
    w1p = jnp.zeros((C, Hp), compute_dtype).at[:, :H].set(w1f.astype(compute_dtype))
    b1p = jnp.zeros((1, Hp), jnp.float32).at[:, :H].set(b1f)
    w2p = jnp.zeros((Hp, Np), compute_dtype).at[:H, :Nc].set(w2.astype(compute_dtype))
    b2p = jnp.zeros((1, Np), jnp.float32).at[:, :Nc].set(b2)
    return {"w1": w1p, "b1": b1p, "w2": w2p, "b2": b2p}, Nc


# ----------------------------------------------------------------------------
# Forward wrapper: batch-tiled pallas_call.
# ----------------------------------------------------------------------------
def reg_head_forward(x, prepped, num_classes, *, batch_tile=512,
                     out_dtype=jnp.float32, vmem_limit_bytes=None):
    """x: (B, C) or (B, C, 1, 1) in its NATIVE dtype (bf16 preferred);
    prepped: output of prepare_reg_head_params."""
    if x.ndim == 4:
        # (B, C, 1, 1) -> (B, C); mirrors the module's view(x.size(0), -1).
        x = x.reshape(x.shape[0], -1)
    B, C = x.shape
    Hp = prepped["w1"].shape[1]
    Np = prepped["w2"].shape[1]

    # Sublane-aligned batch tile (≥8, multiple of 8) unless B itself is < 8
    # (full-array block along batch is always legal).
    if B <= 8:
        tb = B
    else:
        tb = max(8, (min(batch_tile, B) // 8) * 8)
        # Keep ≥4 grid steps when the batch is moderate so x-DMA double
        # buffering / v7x megacore sharding have work to overlap.
        if B > 32 and pl.cdiv(B, tb) < 4:
            tb = max(8, (pl.cdiv(B, 4) // 8) * 8)
    grid = (pl.cdiv(B, tb),)   # ragged last tile handled by Pallas (no jnp.pad)

    in_specs = [
        pl.BlockSpec((tb, C), lambda i: (i, 0)),     # x: streamed per batch tile
        pl.BlockSpec((C, Hp), lambda i: (0, 0)),     # w1 (BN-folded, resident)
        pl.BlockSpec((1, Hp), lambda i: (0, 0)),     # b1 (resident)
        pl.BlockSpec((Hp, Np), lambda i: (0, 0)),    # w2 (resident)
        pl.BlockSpec((1, Np), lambda i: (0, 0)),     # b2 (resident)
    ]
    out_spec = pl.BlockSpec((tb, Np), lambda i: (i, 0))

    cp_kwargs = dict(dimension_semantics=("parallel",))
    if vmem_limit_bytes is not None:
        # v5e scoped default is 16 MiB, v6e/v7x 32 MiB; raise explicitly when
        # a large (tb, C) bf16 double-buffer + weights exceed the default.
        cp_kwargs["vmem_limit_bytes"] = vmem_limit_bytes

    out = pl.pallas_call(
        reg_head_kernel,
        out_shape=jax.ShapeDtypeStruct((B, Np), out_dtype),
        grid=grid,
        in_specs=in_specs,
        out_specs=out_spec,
        compiler_params=pltpu.CompilerParams(**cp_kwargs),
    )(x, prepped["w1"], prepped["b1"], prepped["w2"], prepped["b2"])
    return out[:, :num_classes]


# ----------------------------------------------------------------------------
# Parameter init (matches RegHead.init_weights) + pure-JAX reference.
# ----------------------------------------------------------------------------
def init_params(key, embed_dim, num_classes):
    """Linear weights ~ N(0, 0.01), biases = 0 (as in RegHead.init_weights).
    BN buffers/affine get non-trivial values to exercise the BN path."""
    hidden = embed_dim // 4
    ks = jax.random.split(key, 6)
    return {
        # Linear weights stored as (in_features, out_features) == torch weight.T
        "w1": 0.01 * jax.random.normal(ks[0], (embed_dim, hidden), jnp.float32),
        "b1": jnp.zeros((hidden,), jnp.float32),
        "w2": 0.01 * jax.random.normal(ks[1], (hidden, num_classes), jnp.float32),
        "b2": jnp.zeros((num_classes,), jnp.float32),
        # BatchNorm2d(embed_dim, eps=1e-6) affine + running stats
        "gamma": 1.0 + 0.1 * jax.random.normal(ks[2], (embed_dim,), jnp.float32),
        "beta": 0.1 * jax.random.normal(ks[3], (embed_dim,), jnp.float32),
        "running_mean": 0.5 * jax.random.normal(ks[4], (embed_dim,), jnp.float32),
        "running_var": 0.5 + jax.random.uniform(ks[5], (embed_dim,), jnp.float32),
    }


def _reference_forward(x, p):
    eps = 1e-6
    xn = (x - p["running_mean"]) / jnp.sqrt(p["running_var"] + eps)
    xn = xn * p["gamma"] + p["beta"]
    h = _gelu_exact(xn @ p["w1"] + p["b1"])
    return h @ p["w2"] + p["b2"]


if __name__ == "__main__":
    # Small shapes consistent with the module: embed_dim=64 -> hidden=16, 8 classes.
    B, EMBED_DIM, NUM_CLASSES = 16, 64, 8

    key = jax.random.PRNGKey(0)
    kx, kp = jax.random.split(key)
    # Backbone features arrive as bf16; stream them without an extra f32 pass.
    x = jax.random.normal(kx, (B, EMBED_DIM), jnp.float32).astype(jnp.bfloat16)
    params = init_params(kp, EMBED_DIM, NUM_CLASSES)

    # One-time prep: BN fold + lane padding + bf16 weight cast.
    prepped, nc = prepare_reg_head_params(params)

    # batch_tile=8 so the batch grid (and its pipelining) is actually exercised.
    out = reg_head_forward(x, prepped, nc, batch_tile=8)
    out = jax.block_until_ready(out)

    ref = _reference_forward(x.astype(jnp.float32), params)
    assert out.shape == (B, NUM_CLASSES), out.shape
    err = float(jnp.max(jnp.abs(out - ref)))
    # bf16 matmul operands with f32 accumulation: bf16-level tolerance.
    assert err < 2e-3, err

    print("KERNEL_OK")
</pallas_src>

<mosaic_0001>
module attributes {stable_mosaic.version = 11 : i64} {
  func.func @reg_head_kernel(%arg0: i32, %arg1: memref<8x64xbf16, #tpu.memory_space<vmem>>, %arg2: memref<64x128xbf16, #tpu.memory_space<vmem>>, %arg3: memref<1x128xf32, #tpu.memory_space<vmem>>, %arg4: memref<128x128xbf16, #tpu.memory_space<vmem>>, %arg5: memref<1x128xf32, #tpu.memory_space<vmem>>, %arg6: memref<8x128xf32, #tpu.memory_space<vmem>>) attributes {dimension_semantics = [#tpu.dimension_semantics<parallel>], iteration_bounds = array<i64: 2>, scalar_prefetch = 0 : i64, scratch_operands = 0 : i64, tpu.core_type = #tpu.core_type<tc>, window_params = [{transform_indices = @transform_0, window_bounds = array<i64: 8, 64>}, {pipeline_mode = #tpu.pipeline_mode<synchronous>, transform_indices = @transform_1, window_bounds = array<i64: 64, 128>}, {pipeline_mode = #tpu.pipeline_mode<synchronous>, transform_indices = @transform_2, window_bounds = array<i64: 1, 128>}, {pipeline_mode = #tpu.pipeline_mode<synchronous>, transform_indices = @transform_3, window_bounds = array<i64: 128, 128>}, {pipeline_mode = #tpu.pipeline_mode<synchronous>, transform_indices = @transform_4, window_bounds = array<i64: 1, 128>}, {transform_indices = @transform_5, window_bounds = array<i64: 8, 128>}]} {
    %c0 = arith.constant 0 : index
    %c0_0 = arith.constant 0 : index
    %0 = vector.load %arg1[%c0, %c0_0] : memref<8x64xbf16, #tpu.memory_space<vmem>>, vector<8x64xbf16>
    %c0_1 = arith.constant 0 : index
    %c0_2 = arith.constant 0 : index
    %1 = vector.load %arg2[%c0_1, %c0_2] : memref<64x128xbf16, #tpu.memory_space<vmem>>, vector<64x128xbf16>
    %cst = arith.constant dense<0.000000e+00> : vector<8x128xf32>
    %2 = tpu.matmul %0, %1, %cst {dimension_numbers = #tpu.dot_dimension_numbers<[1], [0], [0], [1], [0, 0, 1, 1], [], []>} : vector<8x64xbf16>, vector<64x128xbf16>, vector<8x128xf32> -> vector<8x128xf32>
    %c0_3 = arith.constant 0 : index
    %c0_4 = arith.constant 0 : index
    %3 = vector.load %arg3[%c0_3, %c0_4] : memref<1x128xf32, #tpu.memory_space<vmem>>, vector<1x128xf32>
    %4 = vector.broadcast %3 : vector<1x128xf32> to vector<8x128xf32>
    %5 = arith.addf %2, %4 : vector<8x128xf32>
    %cst_5 = arith.constant 5.000000e-01 : f32
    %6 = vector.broadcast %cst_5 : f32 to vector<8x128xf32>
    %7 = arith.mulf %6, %5 : vector<8x128xf32>
    %cst_6 = arith.constant 0.707106769 : f32
    %8 = vector.broadcast %cst_6 : f32 to vector<8x128xf32>
    %9 = arith.mulf %5, %8 : vector<8x128xf32>
    %10 = math.erf %9 : vector<8x128xf32>
    %cst_7 = arith.constant 1.000000e+00 : f32
    %11 = vector.broadcast %cst_7 : f32 to vector<8x128xf32>
    %12 = arith.addf %11, %10 : vector<8x128xf32>
    %13 = arith.mulf %7, %12 : vector<8x128xf32>
    %14 = arith.truncf %13 : vector<8x128xf32> to vector<8x128xbf16>
    %c0_8 = arith.constant 0 : index
    %c0_9 = arith.constant 0 : index
    %15 = vector.load %arg4[%c0_8, %c0_9] : memref<128x128xbf16, #tpu.memory_space<vmem>>, vector<128x128xbf16>
    %cst_10 = arith.constant dense<0.000000e+00> : vector<8x128xf32>
    %16 = tpu.matmul %14, %15, %cst_10 {dimension_numbers = #tpu.dot_dimension_numbers<[1], [0], [0], [1], [0, 0, 1, 1], [], []>} : vector<8x128xbf16>, vector<128x128xbf16>, vector<8x128xf32> -> vector<8x128xf32>
    %c0_11 = arith.constant 0 : index
    %c0_12 = arith.constant 0 : index
    %17 = vector.load %arg5[%c0_11, %c0_12] : memref<1x128xf32, #tpu.memory_space<vmem>>, vector<1x128xf32>
    %18 = vector.broadcast %17 : vector<1x128xf32> to vector<8x128xf32>
    %19 = arith.addf %16, %18 : vector<8x128xf32>
    %c0_13 = arith.constant 0 : index
    %c0_14 = arith.constant 0 : index
    %20 = vector.load %arg6[%c0_13, %c0_14] : memref<8x128xf32, #tpu.memory_space<vmem>>, vector<8x128xf32>
    tpu.vector_store %arg6[%c0_13, %c0_14], %19 {strides = array<i32>} : memref<8x128xf32, #tpu.memory_space<vmem>>, vector<8x128xf32>,
    return
  }
  func.func @transform_0(%arg0: i32) -> (i32, i32) {
    %c0_i32 = arith.constant 0 : i32
    %c0_i32_0 = arith.constant 0 : i32
    return %arg0, %c0_i32 : i32, i32
  }
  func.func @transform_1(%arg0: i32) -> (i32, i32) {
    %c0_i32 = arith.constant 0 : i32
    %c0_i32_0 = arith.constant 0 : i32
    %c0_i32_1 = arith.constant 0 : i32
    return %c0_i32, %c0_i32_0 : i32, i32
  }
  func.func @transform_2(%arg0: i32) -> (i32, i32) {
    %c0_i32 = arith.constant 0 : i32
    %c0_i32_0 = arith.constant 0 : i32
    %c0_i32_1 = arith.constant 0 : i32
    return %c0_i32, %c0_i32_0 : i32, i32
  }
  func.func @transform_3(%arg0: i32) -> (i32, i32) {
    %c0_i32 = arith.constant 0 : i32
    %c0_i32_0 = arith.constant 0 : i32
    %c0_i32_1 = arith.constant 0 : i32
    return %c0_i32, %c0_i32_0 : i32, i32
  }
  func.func @transform_4(%arg0: i32) -> (i32, i32) {
    %c0_i32 = arith.constant 0 : i32
    %c0_i32_0 = arith.constant 0 : i32
    %c0_i32_1 = arith.constant 0 : i32
    return %c0_i32, %c0_i32_0 : i32, i32
  }
  func.func @transform_5(%arg0: i32) -> (i32, i32) {
    %c0_i32 = arith.constant 0 : i32
    %c0_i32_0 = arith.constant 0 : i32
    return %arg0, %c0_i32 : i32, i32
  }
}

</mosaic_0001>

<llo_original>
// kernel: tpu_custom_call.1
$region0: #{tpu_custom_call.1}
  #allocation0 [shape = 'u32[]', space=smem, size = 0x4, offset = 0x4, fixed_abs, tag = 'smem constant byte address 0x4 - core index']
  #allocation1 [shape = 'u32[72,128]{1,0:T(1,128)}', space=vmem, size = 0x9000, scoped, tag = 'internal scratch']
  %s0 = inlined_call_operand.hbm [shape: bf16[16,64], index: 0, kind: input, shape index: {}]
  %s1 = inlined_call_operand.hbm [shape: bf16[64,128], index: 1, kind: input, shape index: {}]
  %s2 = inlined_call_operand.vmem [shape: f32[1,128], index: 2, kind: input, shape index: {}]
  %s3 = inlined_call_operand.hbm [shape: bf16[128,128], index: 3, kind: input, shape index: {}]
  %s4 = inlined_call_operand.vmem [shape: f32[1,128], index: 4, kind: input, shape index: {}]
  %s5 = inlined_call_operand.hbm [shape: f32[16,128], index: 5, kind: output, shape index: {}]
  %s6 = sld [smem:[#allocation0]]
  $region65: #{tpu_custom_call.1} parent=0
    _
  %s8 = ssub.s32 1, %s6
  %s9 = scalar_select 0, %s8, %s6
  $region1: #{tpu_custom_call.1} parent=0
    #allocation2 [shape = 'u8[4096]{0}', space=vmem, size = 0x1000, scoped, tag = 'input window, operand 0']
    #allocation3 [shape = 's32[2]{0}', space=sflag, size = 0x8, scoped, tag = 'scoped memory for tpu_custom_call.1']
    #allocation4 [shape = 's32[2]{0}', space=sflag, size = 0x8, scoped, tag = 'scoped memory for tpu_custom_call.1']
    #allocation5 [shape = 'u8[16384]{0}', space=vmem, size = 0x4000, scoped, tag = 'input window, operand 1, single buffered']
    #allocation6 [shape = 's32[1]{0}', space=sflag, size = 0x4, scoped, tag = 'scoped memory for tpu_custom_call.1']
    #allocation7 [shape = 'u8[32768]{0}', space=vmem, size = 0x8000, scoped, tag = 'input window, operand 3, single buffered']
    #allocation8 [shape = 'u8[8192]{0}', space=vmem, size = 0x2000, scoped, tag = 'output window, operand 0']
    %10 = vsyncpa [#allocation3], 0
    %s11 = scalar_lea.sflag [#allocation3], 1
    %12 = vsyncpa %s11, 0
    %13 = vsyncpa [#allocation6], 0
    %14 = vsyncpa [#allocation4], 0
    %s15 = scalar_lea.sflag [#allocation4], 1
    %16 = vsyncpa %s15, 0
    loop: start=0, step=1, limit=4
    $region2: #{tpu_custom_call.1} parent=1 // loop_pre_header
      _
    $region3: #{tpu_custom_call.1} parent=1 // loop_header
      %s18 = sphi 0, %s22
      %p19 = scmp.ge.s32.totalorder %s18, 4
      %s28 = sphi 0, %s30
      %s31 = sphi 0, %s28
      %s32 = sphi 0, %s31
      %s48 = sphi 0, %s32
      %s52 = sphi 0, %s52
      %s54 = sphi 0, %s52
      %s55 = sphi 0, %s54
      %s69 = sphi 0, %s55
      %s73 = sphi 0, %s73
      %s75 = sphi 0, %s73
      %s76 = sphi 0, %s75
      %s90 = sphi 0, %s76
      %s94 = sphi 0, %s94
      %s96 = sphi 0, %s94
      %s97 = sphi 0, %s96
      %s111 = sphi 0, %s97
      %s115 = sphi 0, %s115
      %s117 = sphi 0, %s115
      %s118 = sphi 0, %s117
      %s132 = sphi 0, %s118
      %s138 = sphi 0, %s140
      %s141 = sphi 0, %s138
      %s142 = sphi 0, %s141
      %s158 = sphi 0, %s142
    $region4: #{tpu_custom_call.1} parent=1 // loop_header_branch
      %21 = sbr.rel (%p19) target = $region8
    $region5: #{tpu_custom_call.1} parent=1 // loop_body
      %s23 = ssub.s32 %s18, 1
      %s24 = ssub.s32 %s18, 2
      %s25 = sadd.s32 %s18, 1
      %s26 = ssub.s32 %s18, %s25
      %p27 = scmp.eq.s32.totalorder %s26, 0
      %s29 = sadd.s32 %s28, 1
      %s30 = scalar_select %p27, %s28, %s29
      %p33 = pneg %p27
      %p34 = scmp.eq.s32.totalorder %s18, 1
      %p35 = por %p33, %p34
      %p36 = scmp.ne.s32.totalorder %s28, %s31
      %p37 = scmp.eq.s32.totalorder %s18, 0
      %p38 = por %p36, %p37
      %p39 = scmp.ne.s32.totalorder %s28, %s31
      %p40 = scmp.eq.s32.totalorder %s23, 1
      %p41 = por %p39, %p40
      %p42 = scmp.ne.s32.totalorder %s31, %s32
      %p43 = scmp.eq.s32.totalorder %s23, 0
      %p44 = por %p42, %p43
      %p45 = scmp.ne.s32.totalorder %s31, %s32
      %p46 = scmp.eq.s32.totalorder %s24, 1
      %p47 = por %p45, %p46
      %p49 = scmp.ne.s32.totalorder %s32, %s48
      %p50 = scmp.eq.s32.totalorder %s24, 0
      %p51 = por %p49, %p50
      %s53 = sadd.s32 %s52, 1
      %p56 = scmp.eq.s32.totalorder %s18, 1
      %p57 = scmp.ne.s32.totalorder %s52, %s54
      %p58 = scmp.eq.s32.totalorder %s18, 0
      %p59 = por %p57, %p58
      %p60 = scmp.ne.s32.totalorder %s52, %s54
      %p61 = scmp.eq.s32.totalorder %s23, 1
      %p62 = por %p60, %p61
      %p63 = scmp.ne.s32.totalorder %s54, %s55
      %p64 = scmp.eq.s32.totalorder %s23, 0
      %p65 = por %p63, %p64
      %p66 = scmp.ne.s32.totalorder %s54, %s55
      %p67 = scmp.eq.s32.totalorder %s24, 1
      %p68 = por %p66, %p67
      %p70 = scmp.ne.s32.totalorder %s55, %s69
      %p71 = scmp.eq.s32.totalorder %s24, 0
      %p72 = por %p70, %p71
      %s74 = sadd.s32 %s73, 1
      %p77 = scmp.eq.s32.totalorder %s18, 1
      %p78 = scmp.ne.s32.totalorder %s73, %s75
      %p79 = scmp.eq.s32.totalorder %s18, 0
      %p80 = por %p78, %p79
      %p81 = scmp.ne.s32.totalorder %s73, %s75
      %p82 = scmp.eq.s32.totalorder %s23, 1
      %p83 = por %p81, %p82
      %p84 = scmp.ne.s32.totalorder %s75, %s76
      %p85 = scmp.eq.s32.totalorder %s23, 0
      %p86 = por %p84, %p85
      %p87 = scmp.ne.s32.totalorder %s75, %s76
      %p88 = scmp.eq.s32.totalorder %s24, 1
      %p89 = por %p87, %p88
      %p91 = scmp.ne.s32.totalorder %s76, %s90
      %p92 = scmp.eq.s32.totalorder %s24, 0
      %p93 = por %p91, %p92
      %s95 = sadd.s32 %s94, 1
      %p98 = scmp.eq.s32.totalorder %s18, 1
      %p99 = scmp.ne.s32.totalorder %s94, %s96
      %p100 = scmp.eq.s32.totalorder %s18, 0
      %p101 = por %p99, %p100
      %p102 = scmp.ne.s32.totalorder %s94, %s96
      %p103 = scmp.eq.s32.totalorder %s23, 1
      %p104 = por %p102, %p103
      %p105 = scmp.ne.s32.totalorder %s96, %s97
      %p106 = scmp.eq.s32.totalorder %s23, 0
      %p107 = por %p105, %p106
      %p108 = scmp.ne.s32.totalorder %s96, %s97
      %p109 = scmp.eq.s32.totalorder %s24, 1
      %p110 = por %p108, %p109
      %p112 = scmp.ne.s32.totalorder %s97, %s111
      %p113 = scmp.eq.s32.totalorder %s24, 0
      %p114 = por %p112, %p113
      %s116 = sadd.s32 %s115, 1
      %p119 = scmp.eq.s32.totalorder %s18, 1
      %p120 = scmp.ne.s32.totalorder %s115, %s117
      %p121 = scmp.eq.s32.totalorder %s18, 0
      %p122 = por %p120, %p121
      %p123 = scmp.ne.s32.totalorder %s115, %s117
      %p124 = scmp.eq.s32.totalorder %s23, 1
      %p125 = por %p123, %p124
      %p126 = scmp.ne.s32.totalorder %s117, %s118
      %p127 = scmp.eq.s32.totalorder %s23, 0
      %p128 = por %p126, %p127
      %p129 = scmp.ne.s32.totalorder %s117, %s118
      %p130 = scmp.eq.s32.totalorder %s24, 1
      %p131 = por %p129, %p130
      %p133 = scmp.ne.s32.totalorder %s118, %s132
      %p134 = scmp.eq.s32.totalorder %s24, 0
      %p135 = por %p133, %p134
      %s136 = ssub.s32 %s18, %s25
      %p137 = scmp.eq.s32.totalorder %s136, 0
      %s139 = sadd.s32 %s138, 1
      %s140 = scalar_select %p137, %s138, %s139
      %p143 = pneg %p137
      %p144 = scmp.eq.s32.totalorder %s18, 1
      %p145 = por %p143, %p144
      %p146 = scmp.ne.s32.totalorder %s138, %s141
      %p147 = scmp.eq.s32.totalorder %s18, 0
      %p148 = por %p146, %p147
      %p149 = scmp.ne.s32.totalorder %s138, %s141
      %p150 = scmp.eq.s32.totalorder %s23, 1
      %p151 = por %p149, %p150
      %p152 = scmp.ne.s32.totalorder %s141, %s142
      %p153 = scmp.eq.s32.totalorder %s23, 0
      %p154 = por %p152, %p153
      %p155 = scmp.ne.s32.totalorder %s141, %s142
      %p156 = scmp.eq.s32.totalorder %s24, 1
      %p157 = por %p155, %p156
      %p159 = scmp.ne.s32.totalorder %s142, %s158
      %p160 = scmp.eq.s32.totalorder %s24, 0
      %p161 = por %p159, %p160
      %p162 = scmp.le.s32.totalorder 1, %s18
      %p163 = scmp.lt.s32.totalorder %s18, 3
      %p164 = pnand %p162, %p163
      %p165 = pneg %p164
      // Predicated region
      $region9: #{tpu_custom_call.1} parent=5 // pred_check
        _
      $region10: #{tpu_custom_call.1} parent=5 // pred_check_branch
        %167 = sbr.rel (%p164) target = $region12
      $region11: #{tpu_custom_call.1} parent=5 // pred_region
        %s168 = ssub.s32 %s18, 1
        // Predicated region
        $region13: #{tpu_custom_call.1} parent=11 // pred_check
          %p169 = pneg %p65
        $region14: #{tpu_custom_call.1} parent=11 // pred_check_branch
          %171 = sbr.rel (%p169) target = $region16
        $region15: #{tpu_custom_call.1} parent=11 // pred_region
          %173 = vsyncadd [#allocation6], 0
          %s174 = sshll.u32 %s1, 4
          %s175 = int_to_ptr.hbm [resolvable:$true] %s174
          %s176 = sshll.u32 [#allocation5], 4
          %s177 = int_to_ptr.vmem [resolvable:$true] %s176
          %182 = dma.hbm_to_vmem [thread:$0]  %s175, 512, %s177, [#allocation6], 64, 64, 4
        $region16: #{tpu_custom_call.1} parent=11 // pred_fallthru
          _
        // Predicated region
        $region17: #{tpu_custom_call.1} parent=11 // pred_check
          %p183 = pneg %p86
        $region18: #{tpu_custom_call.1} parent=11 // pred_check_branch
          %185 = sbr.rel (%p183) target = $region20
        $region19: #{tpu_custom_call.1} parent=11 // pred_region
          _
        $region20: #{tpu_custom_call.1} parent=11 // pred_fallthru
          _
        // Predicated region
        $region21: #{tpu_custom_call.1} parent=11 // pred_check
          %p186 = pneg %p107
        $region22: #{tpu_custom_call.1} parent=11 // pred_check_branch
          %188 = sbr.rel (%p186) target = $region24
        $region23: #{tpu_custom_call.1} parent=11 // pred_region
          %190 = vsyncadd [#allocation6], 0
          %s191 = sshll.u32 %s3, 4
          %s192 = int_to_ptr.hbm [resolvable:$true] %s191
          %s193 = sshll.u32 [#allocation7], 4
          %s194 = int_to_ptr.vmem [resolvable:$true] %s193
          %199 = dma.hbm_to_vmem [thread:$0]  %s192, 1024, %s194, [#allocation6], 64, 64, 4
        $region24: #{tpu_custom_call.1} parent=11 // pred_fallthru
          _
        // Predicated region
        $region25: #{tpu_custom_call.1} parent=11 // pred_check
          %p200 = pneg %p128
        $region26: #{tpu_custom_call.1} parent=11 // pred_check_branch
          %202 = sbr.rel (%p200) target = $region28
        $region27: #{tpu_custom_call.1} parent=11 // pred_region
          _
        $region28: #{tpu_custom_call.1} parent=11 // pred_fallthru
          _
      $region12: #{tpu_custom_call.1} parent=5 // pred_fallthru
        _
      %p203 = scmp.lt.s32.totalorder %s18, 2
      // Predicated region
      $region29: #{tpu_custom_call.1} parent=5 // pred_check
        %p204 = pneg %p203
      $region30: #{tpu_custom_call.1} parent=5 // pred_check_branch
        %206 = sbr.rel (%p204) target = $region32
      $region31: #{tpu_custom_call.1} parent=5 // pred_region
        // Predicated region
        $region33: #{tpu_custom_call.1} parent=31 // pred_check
          %p207 = pneg %p38
        $region34: #{tpu_custom_call.1} parent=31 // pred_check_branch
          %209 = sbr.rel (%p207) target = $region36
        $region35: #{tpu_custom_call.1} parent=31 // pred_region
          %s210 = sand.u32 %s28, 1
          %s211 = scalar_lea.sflag [#allocation3], %s210
          %s212 = sand.u32 %s28, 1
          %s213 = smul.addr %s212, 4
          %s214 = scalar_lea.vmem [#allocation2], %s213
          %216 = vsyncadd %s211, 0
          %s217 = smul.addr %s18, 4
          %s218 = scalar_lea.hbm %s0, %s217
          %s220 = sshll.u32 %s218, 4
          %s221 = int_to_ptr.hbm [resolvable:$true] %s220
          %s222 = sshll.u32 %s214, 4
          %s223 = int_to_ptr.vmem [resolvable:$true] %s222
          %225 = dma.hbm_to_vmem [thread:$0]  %s221, 64, %s223, %s211
        $region36: #{tpu_custom_call.1} parent=31 // pred_fallthru
          _
      $region32: #{tpu_custom_call.1} parent=5 // pred_fallthru
        _
      %p226 = scmp.le.s32.totalorder 1, %s18
      %p227 = scmp.lt.s32.totalorder %s18, 3
      %p228 = pnand %p226, %p227
      %p229 = pneg %p228
      // Predicated region
      $region37: #{tpu_custom_call.1} parent=5 // pred_check
        _
      $region38: #{tpu_custom_call.1} parent=5 // pred_check_branch
        %231 = sbr.rel (%p228) target = $region40
      $region39: #{tpu_custom_call.1} parent=5 // pred_region
        %s232 = ssub.s32 %s18, 1
        %s233 = sand.u32 %s31, 1
        %s234 = scalar_lea.sflag [#allocation3], %s233
        %s235 = sand.u32 %s31, 1
        %s236 = smul.addr %s235, 4
        %s237 = scalar_lea.vmem [#allocation2], %s236
        // Predicated region
        $region41: #{tpu_custom_call.1} parent=39 // pred_check
          %p238 = pneg %p44
        $region42: #{tpu_custom_call.1} parent=39 // pred_check_branch
          %240 = sbr.rel (%p238) target = $region44
        $region43: #{tpu_custom_call.1} parent=39 // pred_region
          %242 = dma.done %s234, 64
        $region44: #{tpu_custom_call.1} parent=39 // pred_fallthru
          _
        // Predicated region
        $region45: #{tpu_custom_call.1} parent=39 // pred_check
          %p243 = pneg %p65
        $region46: #{tpu_custom_call.1} parent=39 // pred_check_branch
          %245 = sbr.rel (%p243) target = $region48
        $region47: #{tpu_custom_call.1} parent=39 // pred_region
          %247 = dma.done [#allocation6], 512
        $region48: #{tpu_custom_call.1} parent=39 // pred_fallthru
          _
        // Predicated region
        $region49: #{tpu_custom_call.1} parent=39 // pred_check
          %p248 = pneg %p107
        $region50: #{tpu_custom_call.1} parent=39 // pred_check_branch
          %250 = sbr.rel (%p248) target = $region52
        $region51: #{tpu_custom_call.1} parent=39 // pred_region
          %252 = dma.done [#allocation6], 1024
        $region52: #{tpu_custom_call.1} parent=39 // pred_fallthru
          _
        %s253 = sand.u32 %s31, 1
        %s254 = scalar_lea.sflag [#allocation3], %s253
        %s255 = sand.u32 %s31, 1
        %s256 = smul.addr %s255, 4
        %s257 = scalar_lea.vmem [#allocation2], %s256
        %p258 = pneg %p44
        %p259 = pneg %p41
        %p260 = pneg %p65
        %p261 = pneg %p62
        %p262 = pneg %p86
        %p263 = pneg %p83
        %p264 = pneg %p107
        %p265 = pneg %p104
        %p266 = pneg %p128
        %p267 = pneg %p125
        %p268 = pneg %p154
        %p269 = pneg %p151
        %s270 = sand.u32 %s141, 1
        %s271 = scalar_lea.sflag [#allocation4], %s270
        %s272 = sand.u32 %s141, 1
        %s273 = smul.addr %s272, 8
        %s274 = scalar_lea.vmem [#allocation8], %s273
        %v276 = vld [vmem:[%s237] sm:$0xf]
        %v277 = vld [vmem:[#allocation5] sm:$0xf]
        %v278 = vld [vmem:[#allocation5 + $0x4] sm:$0xf]
        %v279 = vld [vmem:[#allocation5 + $0x8] sm:$0xf]
        %v280 = vld [vmem:[#allocation5 + $0xc] sm:$0xf]
        %v281 = vld [vmem:[#allocation5 + $0x10] sm:$0xf]
        %v282 = vld [vmem:[#allocation5 + $0x14] sm:$0xf]
        %v283 = vld [vmem:[#allocation5 + $0x18] sm:$0xf]
        %v284 = vld [vmem:[#allocation5 + $0x1c] sm:$0xf]
        %v285 = vld [vmem:[%s2] sm:$0x1]
        %v287 = vperm.slane %v285, 0
        %v297 = vunpack.c.l.b16 %v277
        %v298 = vunpack.c.l.b16 %v278
        %v299 = vunpack.c.l.b16 %v279
        %v300 = vunpack.c.l.b16 %v280
        %v301 = vunpack.c.l.b16 %v281
        %v302 = vunpack.c.l.b16 %v282
        %v303 = vunpack.c.l.b16 %v283
        %v304 = vunpack.c.l.b16 %v284
        %v305 = vpack.c.b16 %v298, %v297
        %v306 = vpack.c.b16 %v300, %v299
        %v307 = vpack.c.b16 %v302, %v301
        %v308 = vpack.c.b16 %v304, %v303
        %vm313 = vcmask 523264
        %v315 = vsel %vm313, %v276, 0
        %317 = vmatpush.bf16.msra.mxu0 0
        %318 = vmatpush.bf16.msra.mxu0 0
        %319 = vmatpush.bf16.msra.mxu0 0
        %320 = vmatpush.bf16.msra.mxu0 0
        %321 = vmatpush.bf16.msra.mxu0 %v308
        %322 = vmatpush.bf16.msra.mxu0 %v307
        %323 = vmatpush.bf16.msra.mxu0 %v306
        %324 = vmatpush.bf16.msra.mxu0 %v305
        %325 = vmatmul.bf16.gmra.mxu0 %v315
        %v326 = vpop.f32.mrf.mxu0
        %v327 = vadd.f32 %v287, %v326
        %v328 = vpop.f32.mrf.mxu0
        %329 = vdwg.mxu0
        %v330 = vmul.f32 %v327, 0.5
        %v331 = vmul.f32 %v327, 0.70710677
        %v332 = vmul.f32 %v331, %v331
        %v333 = vmin.f32 16.0, %v332
        %v334 = vmul.f32 %v333, 2.1237322e-06
        %v335 = vadd.f32 %v334, 0.00028619796
        %v336 = vmul.f32 %v333, %v335
        %v337 = vadd.f32 %v336, 0.0036580483
        %v338 = vmul.f32 %v333, %v337
        %v339 = vadd.f32 %v338, 0.05243302
        %v340 = vmul.f32 %v333, %v339
        %v341 = vadd.f32 %v340, 0.18741608
        %v342 = vmul.f32 %v333, %v341
        %v343 = vadd.f32 %v342, 1.1283791
        %v344 = vmul.f32 %v331, %v343
        %v345 = vmul.f32 %v333, 3.8918573e-05
        %v346 = vadd.f32 %v345, 0.001143296
        %v347 = vmul.f32 %v333, %v346
        %v348 = vadd.f32 %v347, 0.014752088
        %v349 = vmul.f32 %v333, %v348
        %v350 = vadd.f32 %v349, 0.112945676
        %v351 = vmul.f32 %v333, %v350
        %v352 = vadd.f32 %v351, 0.4994258
        %v353 = vmul.f32 %v333, %v352
        %v354 = vadd.f32 %v353, 1.0
        %v355 = vrcp.pop %v354
        %v356 = vmul.f32 %v354, %v355
        %v357 = vsub.f32 1.0, %v356
        %v358 = vmul.f32 %v355, %v357
        %v359 = vadd.f32 %v355, %v358
        %vm360 = vweird.f32 %v354
        %vm361 = vweird.f32 %v355
        %vm362 = vmor %vm360, %vm361
        %v363 = vsel %vm362, %v355, %v359
        %v364 = vand.u32 2147483647, %v354
        %vm365 = vcmp.eq.f32.partialorder %v364, 8.507059e+37
        %v366 = vand.u32 %v354, 2147483648
        %v367 = vor.u32 1.1754944e-38, %v366
        %v368 = vsel %vm365, %v367, %v363
        %v369 = vmul.f32 %v344, %v368
        %v370 = vmin.f32 %v369, 1.0
        %v371 = vmax.f32 %v370, -1.0
        %v372 = vadd.f32 %v371, 1.0
        %v373 = vmul.f32 %v330, %v372
        %v374 = vpack.c.bf16 %v373, %v373
        %v375 = vld [vmem:[#allocation7] sm:$0xf]
        %v376 = vld [vmem:[#allocation7 + $0x4] sm:$0xf]
        %v377 = vld [vmem:[#allocation7 + $0x8] sm:$0xf]
        %v378 = vld [vmem:[#allocation7 + $0xc] sm:$0xf]
        %v379 = vld [vmem:[#allocation7 + $0x10] sm:$0xf]
        %v380 = vld [vmem:[#allocation7 + $0x14] sm:$0xf]
        %v381 = vld [vmem:[#allocation7 + $0x18] sm:$0xf]
        %v382 = vld [vmem:[#allocation7 + $0x1c] sm:$0xf]
        %v383 = vld [vmem:[#allocation7 + $0x20] sm:$0xf]
        %v384 = vld [vmem:[#allocation7 + $0x24] sm:$0xf]
        %v385 = vld [vmem:[#allocation7 + $0x28] sm:$0xf]
        %v386 = vld [vmem:[#allocation7 + $0x2c] sm:$0xf]
        %v387 = vld [vmem:[#allocation7 + $0x30] sm:$0xf]
        %v388 = vld [vmem:[#allocation7 + $0x34] sm:$0xf]
        %v389 = vld [vmem:[#allocation7 + $0x38] sm:$0xf]
        %v390 = vld [vmem:[#allocation7 + $0x3c] sm:$0xf]
        %v391 = vld [vmem:[%s4] sm:$0x1]
        %v393 = vperm.slane %v391, 0
        %v411 = vunpack.c.l.b16 %v375
        %v412 = vunpack.c.l.b16 %v376
        %v413 = vunpack.c.l.b16 %v377
        %v414 = vunpack.c.l.b16 %v378
        %v415 = vunpack.c.l.b16 %v379
        %v416 = vunpack.c.l.b16 %v380
        %v417 = vunpack.c.l.b16 %v381
        %v418 = vunpack.c.l.b16 %v382
        %v419 = vunpack.c.l.b16 %v383
        %v420 = vunpack.c.l.b16 %v384
        %v421 = vunpack.c.l.b16 %v385
        %v422 = vunpack.c.l.b16 %v386
        %v423 = vunpack.c.l.b16 %v387
        %v424 = vunpack.c.l.b16 %v388
        %v425 = vunpack.c.l.b16 %v389
        %v426 = vunpack.c.l.b16 %v390
        %v427 = vpack.c.b16 %v412, %v411
        %v428 = vpack.c.b16 %v414, %v413
        %v429 = vpack.c.b16 %v416, %v415
        %v430 = vpack.c.b16 %v418, %v417
        %v431 = vpack.c.b16 %v420, %v419
        %v432 = vpack.c.b16 %v422, %v421
        %v433 = vpack.c.b16 %v424, %v423
        %v434 = vpack.c.b16 %v426, %v425
        %443 = vmatpush.bf16.msra.mxu0 %v434
        %444 = vmatpush.bf16.msra.mxu0 %v433
        %445 = vmatpush.bf16.msra.mxu0 %v432
        %446 = vmatpush.bf16.msra.mxu0 %v431
        %447 = vmatpush.bf16.msra.mxu0 %v430
        %448 = vmatpush.bf16.msra.mxu0 %v429
        %449 = vmatpush.bf16.msra.mxu0 %v428
        %450 = vmatpush.bf16.msra.mxu0 %v427
        %451 = vmatmul.bf16.gmra.mxu0 %v374
        %v452 = vpop.f32.mrf.mxu0
        %v453 = vadd.f32 %v393, %v452
        %v454 = vpop.f32.mrf.mxu0
        %455 = vdwg.mxu0
        %456 = vst [vmem:[%s274] sm:$0xff] %v453
        %s457 = sand.u32 %s141, 1
        %s458 = scalar_lea.sflag [#allocation4], %s457
        %s459 = sand.u32 %s141, 1
        %s460 = smul.addr %s459, 8
        %s461 = scalar_lea.vmem [#allocation8], %s460
        // Predicated region
        $region53: #{tpu_custom_call.1} parent=39 // pred_check
          %p462 = pneg %p151
        $region54: #{tpu_custom_call.1} parent=39 // pred_check_branch
          %464 = sbr.rel (%p462) target = $region56
        $region55: #{tpu_custom_call.1} parent=39 // pred_region
          %466 = vsyncadd %s458, 0
          %s467 = smul.addr %s23, 8
          %s468 = scalar_lea.hbm %s5, %s467
          %s470 = sshll.u32 %s461, 4
          %s471 = int_to_ptr.vmem [resolvable:$true] %s470
          %s472 = sshll.u32 %s468, 4
          %s473 = int_to_ptr.hbm [resolvable:$true] %s472
          %475 = dma.vmem_to_hbm [thread:$0]  %s471, 128, %s473, %s458
        $region56: #{tpu_custom_call.1} parent=39 // pred_fallthru
          _
      $region40: #{tpu_custom_call.1} parent=5 // pred_fallthru
        _
      %p476 = scmp.le.s32.totalorder 2, %s18
      // Predicated region
      $region57: #{tpu_custom_call.1} parent=5 // pred_check
        %p477 = pneg %p476
      $region58: #{tpu_custom_call.1} parent=5 // pred_check_branch
        %479 = sbr.rel (%p477) target = $region60
      $region59: #{tpu_custom_call.1} parent=5 // pred_region
        %s480 = ssub.s32 %s18, 2
        // Predicated region
        $region61: #{tpu_custom_call.1} parent=59 // pred_check
          %p481 = pneg %p157
        $region62: #{tpu_custom_call.1} parent=59 // pred_check_branch
          %483 = sbr.rel (%p481) target = $region64
        $region63: #{tpu_custom_call.1} parent=59 // pred_region
          %s484 = sand.u32 %s142, 1
          %s485 = scalar_lea.sflag [#allocation4], %s484
          %s486 = sand.u32 %s142, 1
          %s487 = smul.addr %s486, 8
          %s488 = scalar_lea.vmem [#allocation8], %s487
          %490 = dma.done %s485, 128
        $region64: #{tpu_custom_call.1} parent=59 // pred_fallthru
          _
      $region60: #{tpu_custom_call.1} parent=5 // pred_fallthru
        _
    $region6: #{tpu_custom_call.1} parent=1 // loop_footer
      %s22 = sadd.s32 1, %s18
    $region7: #{tpu_custom_call.1} parent=1 // loop_footer_branch
      %17 = sbr.rel target = $region3
    $region8: #{tpu_custom_call.1} parent=1 // loop_exit
      _
    %491 = vsyncpa [#allocation3], 1
    %s492 = scalar_lea.sflag [#allocation3], 1
    %493 = vsyncpa %s492, 1
    %494 = vsyncpa [#allocation6], 1
    %495 = vsyncpa [#allocation4], 1
    %s496 = scalar_lea.sflag [#allocation4], 1
    %497 = vsyncpa %s496, 1

</llo_original>
